<compile_context>
chip_gen: v6e
topology: v6e:2x2x1
jax: 0.10.0
libtpu: 0.0.40
codegen_flags: <defaults>
</compile_context>

<pallas_src>
import jax
import jax.numpy as jnp
import numpy as np
from jax.experimental import pallas as pl
from jax.experimental.pallas import tpu as pltpu

LANE = 128
SUBLANE = 8
N_TERMS = 8   # [sum bce dx, bce dy, sq w, sq h, conf_pos, conf_neg, class, num_pos]
NCORES = 2    # leading "parallel" grid axis (2 TCs on v7x; harmless on 1-TC chips)


def _bce_elem(p, t):
    # PyTorch nn.BCELoss element: -(t*log(p) + (1-t)*log(1-p)), logs clamped >= -100.
    logp = jnp.maximum(jnp.log(p), -100.0)
    log1mp = jnp.maximum(jnp.log(1.0 - p), -100.0)
    return -(t * logp + (1.0 - t) * log1mp)


def _yolo_loss_kernel(cell_ref, cls_ref, out_ref):
    """One row tile: elementwise loss terms -> per-lane partial-sum accumulator.

    cell_ref: (11, TILE_R, 128) f32  [pdx,pdy,pw,ph,pconf,mask,nmask,tdx,tdy,tw,th]
    cls_ref : (2, C, TILE_R, 128)    [pre_class, tar_class] (class dim leading)
    out_ref : (N_TERMS, 8, 128) f32  resident accumulator (one block per core)
    """
    @pl.when(pl.program_id(1) == 0)
    def _():
        out_ref[...] = jnp.zeros_like(out_ref)

    pdx, pdy = cell_ref[0], cell_ref[1]
    pw, ph = cell_ref[2], cell_ref[3]
    pconf = cell_ref[4]
    m, nm = cell_ref[5], cell_ref[6]
    tdx, tdy = cell_ref[7], cell_ref[8]
    tw, th = cell_ref[9], cell_ref[10]

    # Binary-mask rewrites (identical to BCE(p*m, t*m) thanks to the -100 clamp;
    # padded / masked-out cells contribute exactly 0).
    t_dx = m * _bce_elem(pdx, tdx)
    t_dy = m * _bce_elem(pdy, tdy)
    t_w = (pw * m - tw * m) ** 2
    t_h = (ph * m - th * m) ** 2

    # Confidence terms share 2 logs instead of 4 per element.
    log_pc = jnp.maximum(jnp.log(pconf), -100.0)
    log_1mpc = jnp.maximum(jnp.log(1.0 - pconf), -100.0)
    t_cpos = -(m * log_pc)          # == BCE(pconf*m, m)
    t_cneg = -(nm * log_1mpc)       # == BCE(pconf*nm, 0)

    # Class: mask-weighted BCE (== selecting pre_class[mask == 1]); the mask is
    # broadcast over the leading class axis in-kernel (no N*C mask in HBM).
    pcls = cls_ref[0].astype(jnp.float32)   # (C, TILE_R, 128)
    tcls = cls_ref[1].astype(jnp.float32)
    # TODO(synk): if tar_class is guaranteed hard 0/1, a single-log BCE
    # (-clamp(log(where(t>0.5, p, 1-p)))) would halve EUP work on this term.
    t_cls = (m[None, :, :] * _bce_elem(pcls, tcls)).sum(axis=0)  # VPU adds over C

    def lane_partials(x):  # (TILE_R, 128) -> (8, 128): pure VPU adds, no XLU
        return x.reshape(-1, SUBLANE, LANE).sum(axis=0)

    terms = (t_dx, t_dy, t_w, t_h, t_cpos, t_cneg, t_cls, m)
    for idx, term in enumerate(terms):
        out_ref[idx, :, :] = out_ref[idx, :, :] + lane_partials(term)


def yolo_loss(predicts, targets, lambda_xy=2.5, lambda_wh=2.5,
              lambda_conf=1.0, lambda_cls=1.0, class_dtype=jnp.float32):
    """6- or 5-prediction branch of YOLOLoss.forward.

    class_dtype: set to jnp.bfloat16 to halve HBM traffic of the (dominant)
    class tensors; compute stays f32 in-kernel.  Default f32 preserves exact
    PyTorch numerics.
    """
    has_class = len(predicts) == 6
    if has_class:
        pre_dx, pre_dy, pre_w, pre_h, pre_conf, pre_class = predicts
        mask, neg_mask, tar_dx, tar_dy, tar_w, tar_h, tar_conf, tar_class = targets
    else:
        pre_dx, pre_dy, pre_w, pre_h, pre_conf = predicts
        mask, neg_mask, tar_dx, tar_dy, tar_w, tar_h, tar_conf = targets
        # Dummy zero class head; contributes exactly 0 to the class sum.
        pre_class = jnp.zeros(mask.shape + (1,), jnp.float32)
        tar_class = jnp.zeros(mask.shape + (1,), jnp.float32)
    # NOTE: tar_conf is unpacked but (exactly like the PyTorch module) never used.
    # NOTE: negative_mask is kept as a real input (not assumed to be 1 - mask) so
    # ignore-region semantics of general YOLO targets are preserved.

    n_cells = int(np.prod(pre_dx.shape))
    n_classes = pre_class.shape[-1]

    # ---- generation-safe tile size ------------------------------------------
    cls_isize = np.dtype(class_dtype).itemsize
    bytes_per_row = (11 * 4 + 2 * n_classes * cls_isize) * LANE  # one row of 128 cells
    # Keep a single block <= ~12 MiB so the double-buffered working set stays
    # well inside v7x's 64 MiB VMEM (and trivially inside v5e/v6e's 128 MiB).
    max_tile_r = max(SUBLANE,
                     min(1024, (12 * 1024 * 1024 // bytes_per_row) // SUBLANE * SUBLANE))
    rows = -(-n_cells // LANE)
    rows_per_core = -(-rows // NCORES)
    tile_r = min(max_tile_r, -(-rows_per_core // SUBLANE) * SUBLANE)
    tiles_per_core = -(-rows_per_core // tile_r)
    total_rows = NCORES * tiles_per_core * tile_r
    padded_n = total_rows * LANE

    # ---- pack inputs: one stacked cell buffer + one stacked class buffer ----
    cell_list = [pre_dx, pre_dy, pre_w, pre_h, pre_conf, mask, neg_mask,
                 tar_dx, tar_dy, tar_w, tar_h]
    cell = jnp.stack([a.reshape(-1).astype(jnp.float32) for a in cell_list])
    cell = jnp.pad(cell, ((0, 0), (0, padded_n - n_cells)))
    cell = cell.reshape(11, total_rows, LANE)

    cls = jnp.stack([pre_class.reshape(-1, n_classes).T,
                     tar_class.reshape(-1, n_classes).T]).astype(class_dtype)
    cls = jnp.pad(cls, ((0, 0), (0, 0), (0, padded_n - n_cells)))
    cls = cls.reshape(2, n_classes, total_rows, LANE)

    cost = pl.CostEstimate(
        flops=int(padded_n * (40 + 10 * n_classes)),
        transcendentals=int(padded_n * (6 + 2 * n_classes)),
        bytes_accessed=int(cell.size * 4 + cls.size * cls_isize),
    )

    partials = pl.pallas_call(
        _yolo_loss_kernel,
        out_shape=jax.ShapeDtypeStruct((NCORES, N_TERMS, SUBLANE, LANE), jnp.float32),
        grid=(NCORES, tiles_per_core),
        in_specs=[
            pl.BlockSpec((11, tile_r, LANE),
                         lambda c, i: (0, c * tiles_per_core + i, 0)),
            pl.BlockSpec((2, n_classes, tile_r, LANE),
                         lambda c, i: (0, 0, c * tiles_per_core + i, 0)),
        ],
        out_specs=pl.BlockSpec((None, N_TERMS, SUBLANE, LANE),
                               lambda c, i: (c, 0, 0, 0)),
        compiler_params=pltpu.CompilerParams(
            dimension_semantics=("parallel", "arbitrary"),
            vmem_limit_bytes=32 * 1024 * 1024),
        cost_estimate=cost,
    )(cell, cls)

    sums = jnp.sum(partials, axis=(0, 2, 3))   # (N_TERMS,) tiny wrapper-side reduce

    n = jnp.float32(n_cells)
    loss_dx = sums[0] / n
    loss_dy = sums[1] / n
    loss_w = sums[2] / n
    loss_h = sums[3] / n
    loss_conf = sums[4] / n + 0.1 * (sums[5] / n)
    if has_class:
        # Same denominator as torch (num positives * C); inf/NaN if no positive
        # cell, identical to the PyTorch module's behaviour.
        loss_cls = sums[6] / (sums[7] * jnp.float32(n_classes))
    else:
        loss_cls = jnp.float32(0.0)
    loss = (lambda_xy * (loss_dx + loss_dy) + lambda_wh * (loss_w + loss_h)
            + lambda_conf * loss_conf + lambda_cls * loss_cls)
    return loss, loss_dx, loss_dy, loss_w, loss_h, loss_conf, loss_cls


def yolo_loss_ref(predicts, targets, lambda_xy=2.5, lambda_wh=2.5,
                  lambda_conf=1.0, lambda_cls=1.0):
    """Plain-JAX reference mirroring torch semantics (mean reductions)."""
    pre_dx, pre_dy, pre_w, pre_h, pre_conf, pre_class = predicts
    mask, neg_mask, tar_dx, tar_dy, tar_w, tar_h, tar_conf, tar_class = targets
    bce = lambda p, t: jnp.mean(_bce_elem(p, t))
    loss_dx = bce(pre_dx * mask, tar_dx * mask)
    loss_dy = bce(pre_dy * mask, tar_dy * mask)
    loss_w = jnp.mean((pre_w * mask - tar_w * mask) ** 2)
    loss_h = jnp.mean((pre_h * mask - tar_h * mask) ** 2)
    loss_conf = bce(pre_conf * mask, mask) + 0.1 * bce(pre_conf * neg_mask,
                                                       neg_mask * 0.0)
    sel = mask[..., None]
    loss_cls = jnp.sum(sel * _bce_elem(pre_class, tar_class)) / (
        jnp.sum(mask) * pre_class.shape[-1])
    loss = (lambda_xy * (loss_dx + loss_dy) + lambda_wh * (loss_w + loss_h)
            + lambda_conf * loss_conf + lambda_cls * loss_cls)
    return loss, loss_dx, loss_dy, loss_w, loss_h, loss_conf, loss_cls


if __name__ == "__main__":
    # YOLOLoss has no learnable parameters; only hyperparameters.
    key = jax.random.PRNGKey(0)
    B, A, H, W, C = 2, 3, 8, 8, 4
    shape = (B, A, H, W)
    keys = jax.random.split(key, 12)

    pre_dx = jax.nn.sigmoid(jax.random.normal(keys[0], shape))
    pre_dy = jax.nn.sigmoid(jax.random.normal(keys[1], shape))
    pre_w = jax.random.normal(keys[2], shape)
    pre_h = jax.random.normal(keys[3], shape)
    pre_conf = jax.nn.sigmoid(jax.random.normal(keys[4], shape))
    pre_class = jax.nn.sigmoid(jax.random.normal(keys[5], shape + (C,)))

    mask = jax.random.bernoulli(keys[6], 0.1, shape).astype(jnp.float32)
    mask = mask.at[0, 0, 0, 0].set(1.0)          # guarantee >= 1 positive cell
    neg_mask = 1.0 - mask
    tar_dx = jax.random.uniform(keys[7], shape)
    tar_dy = jax.random.uniform(keys[8], shape)
    tar_w = jax.random.normal(keys[9], shape)
    tar_h = jax.random.normal(keys[10], shape)
    tar_conf = mask
    tar_class = jax.random.bernoulli(keys[11], 0.3, shape + (C,)).astype(jnp.float32)

    predicts = (pre_dx, pre_dy, pre_w, pre_h, pre_conf, pre_class)
    targets = (mask, neg_mask, tar_dx, tar_dy, tar_w, tar_h, tar_conf, tar_class)

    out = yolo_loss(predicts, targets)
    out = jax.block_until_ready(out)

    ref = yolo_loss_ref(predicts, targets)
    for got, want in zip(out, ref):
        np.testing.assert_allclose(np.asarray(got), np.asarray(want),
                                   rtol=2e-3, atol=1e-5)
    print("KERNEL_OK")
</pallas_src>

<mosaic_0001>
module attributes {stable_mosaic.version = 11 : i64} {
  func.func @_yolo_loss_kernel(%arg0: i32, %arg1: i32, %arg2: memref<11x8x128xf32, #tpu.memory_space<vmem>>, %arg3: memref<2x4x8x128xf32, #tpu.memory_space<vmem>>, %arg4: memref<1x8x8x128xf32, #tpu.memory_space<vmem>>) attributes {dimension_semantics = [#tpu.dimension_semantics<parallel>, #tpu.dimension_semantics<arbitrary>], iteration_bounds = array<i64: 2, 1>, scalar_prefetch = 0 : i64, scratch_operands = 0 : i64, tpu.core_type = #tpu.core_type<tc>, window_params = [{transform_indices = @transform_0, window_bounds = array<i64: 11, 8, 128>}, {transform_indices = @transform_1, window_bounds = array<i64: 2, 4, 8, 128>}, {transform_indices = @transform_2, window_bounds = array<i64: 1, 8, 8, 128>}]} {
    %c0_i32 = arith.constant 0 : i32
    %0 = arith.cmpi eq, %arg1, %c0_i32 : i32
    %1 = arith.extui %0 : i1 to i32
    %c0_i32_0 = arith.constant 0 : i32
    %2 = arith.cmpi ne, %1, %c0_i32_0 : i32
    scf.if %2 {
      %cst_123 = arith.constant 0.000000e+00 : f32
      %166 = vector.broadcast %cst_123 : f32 to vector<8x8x128xf32>
      %c0_124 = arith.constant 0 : index
      %c0_125 = arith.constant 0 : index
      %c0_126 = arith.constant 0 : index
      %c0_127 = arith.constant 0 : index
      %167 = vector.load %arg4[%c0_124, %c0_125, %c0_126, %c0_127] : memref<1x8x8x128xf32, #tpu.memory_space<vmem>>, vector<1x8x8x128xf32>
      %168 = vector.shape_cast %167 : vector<1x8x8x128xf32> to vector<8x8x128xf32>
      %169 = vector.shape_cast %166 : vector<8x8x128xf32> to vector<1x8x8x128xf32>
      tpu.vector_store %arg4[%c0_124, %c0_125, %c0_126, %c0_127], %169 {strides = array<i32>} : memref<1x8x8x128xf32, #tpu.memory_space<vmem>>, vector<1x8x8x128xf32>,
    } else {
    }
    %c0 = arith.constant 0 : index
    %c0_1 = arith.constant 0 : index
    %c0_2 = arith.constant 0 : index
    %3 = vector.load %arg2[%c0, %c0_1, %c0_2] : memref<11x8x128xf32, #tpu.memory_space<vmem>>, vector<1x8x128xf32>
    %4 = vector.shape_cast %3 : vector<1x8x128xf32> to vector<8x128xf32>
    %c1 = arith.constant 1 : index
    %c0_3 = arith.constant 0 : index
    %c0_4 = arith.constant 0 : index
    %5 = vector.load %arg2[%c1, %c0_3, %c0_4] : memref<11x8x128xf32, #tpu.memory_space<vmem>>, vector<1x8x128xf32>
    %6 = vector.shape_cast %5 : vector<1x8x128xf32> to vector<8x128xf32>
    %c2 = arith.constant 2 : index
    %c0_5 = arith.constant 0 : index
    %c0_6 = arith.constant 0 : index
    %7 = vector.load %arg2[%c2, %c0_5, %c0_6] : memref<11x8x128xf32, #tpu.memory_space<vmem>>, vector<1x8x128xf32>
    %8 = vector.shape_cast %7 : vector<1x8x128xf32> to vector<8x128xf32>
    %c3 = arith.constant 3 : index
    %c0_7 = arith.constant 0 : index
    %c0_8 = arith.constant 0 : index
    %9 = vector.load %arg2[%c3, %c0_7, %c0_8] : memref<11x8x128xf32, #tpu.memory_space<vmem>>, vector<1x8x128xf32>
    %10 = vector.shape_cast %9 : vector<1x8x128xf32> to vector<8x128xf32>
    %c4 = arith.constant 4 : index
    %c0_9 = arith.constant 0 : index
    %c0_10 = arith.constant 0 : index
    %11 = vector.load %arg2[%c4, %c0_9, %c0_10] : memref<11x8x128xf32, #tpu.memory_space<vmem>>, vector<1x8x128xf32>
    %12 = vector.shape_cast %11 : vector<1x8x128xf32> to vector<8x128xf32>
    %c5 = arith.constant 5 : index
    %c0_11 = arith.constant 0 : index
    %c0_12 = arith.constant 0 : index
    %13 = vector.load %arg2[%c5, %c0_11, %c0_12] : memref<11x8x128xf32, #tpu.memory_space<vmem>>, vector<1x8x128xf32>
    %14 = vector.shape_cast %13 : vector<1x8x128xf32> to vector<8x128xf32>
    %c6 = arith.constant 6 : index
    %c0_13 = arith.constant 0 : index
    %c0_14 = arith.constant 0 : index
    %15 = vector.load %arg2[%c6, %c0_13, %c0_14] : memref<11x8x128xf32, #tpu.memory_space<vmem>>, vector<1x8x128xf32>
    %16 = vector.shape_cast %15 : vector<1x8x128xf32> to vector<8x128xf32>
    %c7 = arith.constant 7 : index
    %c0_15 = arith.constant 0 : index
    %c0_16 = arith.constant 0 : index
    %17 = vector.load %arg2[%c7, %c0_15, %c0_16] : memref<11x8x128xf32, #tpu.memory_space<vmem>>, vector<1x8x128xf32>
    %18 = vector.shape_cast %17 : vector<1x8x128xf32> to vector<8x128xf32>
    %c8 = arith.constant 8 : index
    %c0_17 = arith.constant 0 : index
    %c0_18 = arith.constant 0 : index
    %19 = vector.load %arg2[%c8, %c0_17, %c0_18] : memref<11x8x128xf32, #tpu.memory_space<vmem>>, vector<1x8x128xf32>
    %20 = vector.shape_cast %19 : vector<1x8x128xf32> to vector<8x128xf32>
    %c9 = arith.constant 9 : index
    %c0_19 = arith.constant 0 : index
    %c0_20 = arith.constant 0 : index
    %21 = vector.load %arg2[%c9, %c0_19, %c0_20] : memref<11x8x128xf32, #tpu.memory_space<vmem>>, vector<1x8x128xf32>
    %22 = vector.shape_cast %21 : vector<1x8x128xf32> to vector<8x128xf32>
    %c10 = arith.constant 10 : index
    %c0_21 = arith.constant 0 : index
    %c0_22 = arith.constant 0 : index
    %23 = vector.load %arg2[%c10, %c0_21, %c0_22] : memref<11x8x128xf32, #tpu.memory_space<vmem>>, vector<1x8x128xf32>
    %24 = vector.shape_cast %23 : vector<1x8x128xf32> to vector<8x128xf32>
    %25 = math.log %4 : vector<8x128xf32>
    %cst = arith.constant -1.000000e+02 : f32
    %26 = vector.broadcast %cst : f32 to vector<8x128xf32>
    %27 = arith.maximumf %25, %26 : vector<8x128xf32>
    %cst_23 = arith.constant 1.000000e+00 : f32
    %28 = vector.broadcast %cst_23 : f32 to vector<8x128xf32>
    %29 = arith.subf %28, %4 : vector<8x128xf32>
    %30 = math.log %29 : vector<8x128xf32>
    %cst_24 = arith.constant -1.000000e+02 : f32
    %31 = vector.broadcast %cst_24 : f32 to vector<8x128xf32>
    %32 = arith.maximumf %30, %31 : vector<8x128xf32>
    %33 = arith.mulf %18, %27 : vector<8x128xf32>
    %cst_25 = arith.constant 1.000000e+00 : f32
    %34 = vector.broadcast %cst_25 : f32 to vector<8x128xf32>
    %35 = arith.subf %34, %18 : vector<8x128xf32>
    %36 = arith.mulf %35, %32 : vector<8x128xf32>
    %37 = arith.addf %33, %36 : vector<8x128xf32>
    %cst_26 = arith.constant 0.000000e+00 : f32
    %38 = vector.broadcast %cst_26 : f32 to vector<8x128xf32>
    %39 = arith.subf %38, %37 : vector<8x128xf32>
    %40 = arith.mulf %14, %39 : vector<8x128xf32>
    %41 = math.log %6 : vector<8x128xf32>
    %cst_27 = arith.constant -1.000000e+02 : f32
    %42 = vector.broadcast %cst_27 : f32 to vector<8x128xf32>
    %43 = arith.maximumf %41, %42 : vector<8x128xf32>
    %cst_28 = arith.constant 1.000000e+00 : f32
    %44 = vector.broadcast %cst_28 : f32 to vector<8x128xf32>
    %45 = arith.subf %44, %6 : vector<8x128xf32>
    %46 = math.log %45 : vector<8x128xf32>
    %cst_29 = arith.constant -1.000000e+02 : f32
    %47 = vector.broadcast %cst_29 : f32 to vector<8x128xf32>
    %48 = arith.maximumf %46, %47 : vector<8x128xf32>
    %49 = arith.mulf %20, %43 : vector<8x128xf32>
    %cst_30 = arith.constant 1.000000e+00 : f32
    %50 = vector.broadcast %cst_30 : f32 to vector<8x128xf32>
    %51 = arith.subf %50, %20 : vector<8x128xf32>
    %52 = arith.mulf %51, %48 : vector<8x128xf32>
    %53 = arith.addf %49, %52 : vector<8x128xf32>
    %cst_31 = arith.constant 0.000000e+00 : f32
    %54 = vector.broadcast %cst_31 : f32 to vector<8x128xf32>
    %55 = arith.subf %54, %53 : vector<8x128xf32>
    %56 = arith.mulf %14, %55 : vector<8x128xf32>
    %57 = arith.mulf %8, %14 : vector<8x128xf32>
    %58 = arith.mulf %22, %14 : vector<8x128xf32>
    %59 = arith.subf %57, %58 : vector<8x128xf32>
    %60 = arith.mulf %59, %59 : vector<8x128xf32>
    %61 = arith.mulf %10, %14 : vector<8x128xf32>
    %62 = arith.mulf %24, %14 : vector<8x128xf32>
    %63 = arith.subf %61, %62 : vector<8x128xf32>
    %64 = arith.mulf %63, %63 : vector<8x128xf32>
    %65 = math.log %12 : vector<8x128xf32>
    %cst_32 = arith.constant -1.000000e+02 : f32
    %66 = vector.broadcast %cst_32 : f32 to vector<8x128xf32>
    %67 = arith.maximumf %65, %66 : vector<8x128xf32>
    %cst_33 = arith.constant 1.000000e+00 : f32
    %68 = vector.broadcast %cst_33 : f32 to vector<8x128xf32>
    %69 = arith.subf %68, %12 : vector<8x128xf32>
    %70 = math.log %69 : vector<8x128xf32>
    %cst_34 = arith.constant -1.000000e+02 : f32
    %71 = vector.broadcast %cst_34 : f32 to vector<8x128xf32>
    %72 = arith.maximumf %70, %71 : vector<8x128xf32>
    %73 = arith.mulf %14, %67 : vector<8x128xf32>
    %cst_35 = arith.constant 0.000000e+00 : f32
    %74 = vector.broadcast %cst_35 : f32 to vector<8x128xf32>
    %75 = arith.subf %74, %73 : vector<8x128xf32>
    %76 = arith.mulf %16, %72 : vector<8x128xf32>
    %cst_36 = arith.constant 0.000000e+00 : f32
    %77 = vector.broadcast %cst_36 : f32 to vector<8x128xf32>
    %78 = arith.subf %77, %76 : vector<8x128xf32>
    %c0_37 = arith.constant 0 : index
    %c0_38 = arith.constant 0 : index
    %c0_39 = arith.constant 0 : index
    %c0_40 = arith.constant 0 : index
    %79 = vector.load %arg3[%c0_37, %c0_38, %c0_39, %c0_40] : memref<2x4x8x128xf32, #tpu.memory_space<vmem>>, vector<1x4x8x128xf32>
    %80 = vector.shape_cast %79 : vector<1x4x8x128xf32> to vector<4x8x128xf32>
    %c1_41 = arith.constant 1 : index
    %c0_42 = arith.constant 0 : index
    %c0_43 = arith.constant 0 : index
    %c0_44 = arith.constant 0 : index
    %81 = vector.load %arg3[%c1_41, %c0_42, %c0_43, %c0_44] : memref<2x4x8x128xf32, #tpu.memory_space<vmem>>, vector<1x4x8x128xf32>
    %82 = vector.shape_cast %81 : vector<1x4x8x128xf32> to vector<4x8x128xf32>
    %83 = vector.shape_cast %14 : vector<8x128xf32> to vector<1x8x128xf32>
    %84 = math.log %80 : vector<4x8x128xf32>
    %cst_45 = arith.constant -1.000000e+02 : f32
    %85 = vector.broadcast %cst_45 : f32 to vector<4x8x128xf32>
    %86 = arith.maximumf %84, %85 : vector<4x8x128xf32>
    %cst_46 = arith.constant 1.000000e+00 : f32
    %87 = vector.broadcast %cst_46 : f32 to vector<4x8x128xf32>
    %88 = arith.subf %87, %80 : vector<4x8x128xf32>
    %89 = math.log %88 : vector<4x8x128xf32>
    %cst_47 = arith.constant -1.000000e+02 : f32
    %90 = vector.broadcast %cst_47 : f32 to vector<4x8x128xf32>
    %91 = arith.maximumf %89, %90 : vector<4x8x128xf32>
    %92 = arith.mulf %82, %86 : vector<4x8x128xf32>
    %cst_48 = arith.constant 1.000000e+00 : f32
    %93 = vector.broadcast %cst_48 : f32 to vector<4x8x128xf32>
    %94 = arith.subf %93, %82 : vector<4x8x128xf32>
    %95 = arith.mulf %94, %91 : vector<4x8x128xf32>
    %96 = arith.addf %92, %95 : vector<4x8x128xf32>
    %cst_49 = arith.constant 0.000000e+00 : f32
    %97 = vector.broadcast %cst_49 : f32 to vector<4x8x128xf32>
    %98 = arith.subf %97, %96 : vector<4x8x128xf32>
    %99 = vector.broadcast %83 : vector<1x8x128xf32> to vector<4x8x128xf32>
    %100 = arith.mulf %99, %98 : vector<4x8x128xf32>
    %cst_50 = arith.constant dense<0.000000e+00> : vector<8x128xf32>
    %101 = vector.multi_reduction <add>, %100, %cst_50 [0] : vector<4x8x128xf32> to vector<8x128xf32>
    %c0_51 = arith.constant 0 : index
    %c0_52 = arith.constant 0 : index
    %c0_53 = arith.constant 0 : index
    %c0_54 = arith.constant 0 : index
    %102 = vector.load %arg4[%c0_51, %c0_52, %c0_53, %c0_54] : memref<1x8x8x128xf32, #tpu.memory_space<vmem>>, vector<1x1x8x128xf32>
    %103 = vector.shape_cast %102 : vector<1x1x8x128xf32> to vector<8x128xf32>
    %104 = vector.shape_cast %40 : vector<8x128xf32> to vector<1x8x128xf32>
    %cst_55 = arith.constant dense<0.000000e+00> : vector<8x128xf32>
    %105 = vector.multi_reduction <add>, %104, %cst_55 [0] : vector<1x8x128xf32> to vector<8x128xf32>
    %106 = arith.addf %103, %105 : vector<8x128xf32>
    %c0_56 = arith.constant 0 : index
    %c0_57 = arith.constant 0 : index
    %c0_58 = arith.constant 0 : index
    %c0_59 = arith.constant 0 : index
    %107 = vector.load %arg4[%c0_56, %c0_57, %c0_58, %c0_59] : memref<1x8x8x128xf32, #tpu.memory_space<vmem>>, vector<1x1x8x128xf32>
    %108 = vector.shape_cast %107 : vector<1x1x8x128xf32> to vector<8x128xf32>
    %109 = vector.shape_cast %106 : vector<8x128xf32> to vector<1x1x8x128xf32>
    tpu.vector_store %arg4[%c0_56, %c0_57, %c0_58, %c0_59], %109 {strides = array<i32>} : memref<1x8x8x128xf32, #tpu.memory_space<vmem>>, vector<1x1x8x128xf32>,
    %c0_60 = arith.constant 0 : index
    %c1_61 = arith.constant 1 : index
    %c0_62 = arith.constant 0 : index
    %c0_63 = arith.constant 0 : index
    %110 = vector.load %arg4[%c0_60, %c1_61, %c0_62, %c0_63] : memref<1x8x8x128xf32, #tpu.memory_space<vmem>>, vector<1x1x8x128xf32>
    %111 = vector.shape_cast %110 : vector<1x1x8x128xf32> to vector<8x128xf32>
    %112 = vector.shape_cast %56 : vector<8x128xf32> to vector<1x8x128xf32>
    %cst_64 = arith.constant dense<0.000000e+00> : vector<8x128xf32>
    %113 = vector.multi_reduction <add>, %112, %cst_64 [0] : vector<1x8x128xf32> to vector<8x128xf32>
    %114 = arith.addf %111, %113 : vector<8x128xf32>
    %c0_65 = arith.constant 0 : index
    %c1_66 = arith.constant 1 : index
    %c0_67 = arith.constant 0 : index
    %c0_68 = arith.constant 0 : index
    %115 = vector.load %arg4[%c0_65, %c1_66, %c0_67, %c0_68] : memref<1x8x8x128xf32, #tpu.memory_space<vmem>>, vector<1x1x8x128xf32>
    %116 = vector.shape_cast %115 : vector<1x1x8x128xf32> to vector<8x128xf32>
    %117 = vector.shape_cast %114 : vector<8x128xf32> to vector<1x1x8x128xf32>
    tpu.vector_store %arg4[%c0_65, %c1_66, %c0_67, %c0_68], %117 {strides = array<i32>} : memref<1x8x8x128xf32, #tpu.memory_space<vmem>>, vector<1x1x8x128xf32>,
    %c0_69 = arith.constant 0 : index
    %c2_70 = arith.constant 2 : index
    %c0_71 = arith.constant 0 : index
    %c0_72 = arith.constant 0 : index
    %118 = vector.load %arg4[%c0_69, %c2_70, %c0_71, %c0_72] : memref<1x8x8x128xf32, #tpu.memory_space<vmem>>, vector<1x1x8x128xf32>
    %119 = vector.shape_cast %118 : vector<1x1x8x128xf32> to vector<8x128xf32>
    %120 = vector.shape_cast %60 : vector<8x128xf32> to vector<1x8x128xf32>
    %cst_73 = arith.constant dense<0.000000e+00> : vector<8x128xf32>
    %121 = vector.multi_reduction <add>, %120, %cst_73 [0] : vector<1x8x128xf32> to vector<8x128xf32>
    %122 = arith.addf %119, %121 : vector<8x128xf32>
    %c0_74 = arith.constant 0 : index
    %c2_75 = arith.constant 2 : index
    %c0_76 = arith.constant 0 : index
    %c0_77 = arith.constant 0 : index
    %123 = vector.load %arg4[%c0_74, %c2_75, %c0_76, %c0_77] : memref<1x8x8x128xf32, #tpu.memory_space<vmem>>, vector<1x1x8x128xf32>
    %124 = vector.shape_cast %123 : vector<1x1x8x128xf32> to vector<8x128xf32>
    %125 = vector.shape_cast %122 : vector<8x128xf32> to vector<1x1x8x128xf32>
    tpu.vector_store %arg4[%c0_74, %c2_75, %c0_76, %c0_77], %125 {strides = array<i32>} : memref<1x8x8x128xf32, #tpu.memory_space<vmem>>, vector<1x1x8x128xf32>,
    %c0_78 = arith.constant 0 : index
    %c3_79 = arith.constant 3 : index
    %c0_80 = arith.constant 0 : index
    %c0_81 = arith.constant 0 : index
    %126 = vector.load %arg4[%c0_78, %c3_79, %c0_80, %c0_81] : memref<1x8x8x128xf32, #tpu.memory_space<vmem>>, vector<1x1x8x128xf32>
    %127 = vector.shape_cast %126 : vector<1x1x8x128xf32> to vector<8x128xf32>
    %128 = vector.shape_cast %64 : vector<8x128xf32> to vector<1x8x128xf32>
    %cst_82 = arith.constant dense<0.000000e+00> : vector<8x128xf32>
    %129 = vector.multi_reduction <add>, %128, %cst_82 [0] : vector<1x8x128xf32> to vector<8x128xf32>
    %130 = arith.addf %127, %129 : vector<8x128xf32>
    %c0_83 = arith.constant 0 : index
    %c3_84 = arith.constant 3 : index
    %c0_85 = arith.constant 0 : index
    %c0_86 = arith.constant 0 : index
    %131 = vector.load %arg4[%c0_83, %c3_84, %c0_85, %c0_86] : memref<1x8x8x128xf32, #tpu.memory_space<vmem>>, vector<1x1x8x128xf32>
    %132 = vector.shape_cast %131 : vector<1x1x8x128xf32> to vector<8x128xf32>
    %133 = vector.shape_cast %130 : vector<8x128xf32> to vector<1x1x8x128xf32>
    tpu.vector_store %arg4[%c0_83, %c3_84, %c0_85, %c0_86], %133 {strides = array<i32>} : memref<1x8x8x128xf32, #tpu.memory_space<vmem>>, vector<1x1x8x128xf32>,
    %c0_87 = arith.constant 0 : index
    %c4_88 = arith.constant 4 : index
    %c0_89 = arith.constant 0 : index
    %c0_90 = arith.constant 0 : index
    %134 = vector.load %arg4[%c0_87, %c4_88, %c0_89, %c0_90] : memref<1x8x8x128xf32, #tpu.memory_space<vmem>>, vector<1x1x8x128xf32>
    %135 = vector.shape_cast %134 : vector<1x1x8x128xf32> to vector<8x128xf32>
    %136 = vector.shape_cast %75 : vector<8x128xf32> to vector<1x8x128xf32>
    %cst_91 = arith.constant dense<0.000000e+00> : vector<8x128xf32>
    %137 = vector.multi_reduction <add>, %136, %cst_91 [0] : vector<1x8x128xf32> to vector<8x128xf32>
    %138 = arith.addf %135, %137 : vector<8x128xf32>
    %c0_92 = arith.constant 0 : index
    %c4_93 = arith.constant 4 : index
    %c0_94 = arith.constant 0 : index
    %c0_95 = arith.constant 0 : index
    %139 = vector.load %arg4[%c0_92, %c4_93, %c0_94, %c0_95] : memref<1x8x8x128xf32, #tpu.memory_space<vmem>>, vector<1x1x8x128xf32>
    %140 = vector.shape_cast %139 : vector<1x1x8x128xf32> to vector<8x128xf32>
    %141 = vector.shape_cast %138 : vector<8x128xf32> to vector<1x1x8x128xf32>
    tpu.vector_store %arg4[%c0_92, %c4_93, %c0_94, %c0_95], %141 {strides = array<i32>} : memref<1x8x8x128xf32, #tpu.memory_space<vmem>>, vector<1x1x8x128xf32>,
    %c0_96 = arith.constant 0 : index
    %c5_97 = arith.constant 5 : index
    %c0_98 = arith.constant 0 : index
    %c0_99 = arith.constant 0 : index
    %142 = vector.load %arg4[%c0_96, %c5_97, %c0_98, %c0_99] : memref<1x8x8x128xf32, #tpu.memory_space<vmem>>, vector<1x1x8x128xf32>
    %143 = vector.shape_cast %142 : vector<1x1x8x128xf32> to vector<8x128xf32>
    %144 = vector.shape_cast %78 : vector<8x128xf32> to vector<1x8x128xf32>
    %cst_100 = arith.constant dense<0.000000e+00> : vector<8x128xf32>
    %145 = vector.multi_reduction <add>, %144, %cst_100 [0] : vector<1x8x128xf32> to vector<8x128xf32>
    %146 = arith.addf %143, %145 : vector<8x128xf32>
    %c0_101 = arith.constant 0 : index
    %c5_102 = arith.constant 5 : index
    %c0_103 = arith.constant 0 : index
    %c0_104 = arith.constant 0 : index
    %147 = vector.load %arg4[%c0_101, %c5_102, %c0_103, %c0_104] : memref<1x8x8x128xf32, #tpu.memory_space<vmem>>, vector<1x1x8x128xf32>
    %148 = vector.shape_cast %147 : vector<1x1x8x128xf32> to vector<8x128xf32>
    %149 = vector.shape_cast %146 : vector<8x128xf32> to vector<1x1x8x128xf32>
    tpu.vector_store %arg4[%c0_101, %c5_102, %c0_103, %c0_104], %149 {strides = array<i32>} : memref<1x8x8x128xf32, #tpu.memory_space<vmem>>, vector<1x1x8x128xf32>,
    %c0_105 = arith.constant 0 : index
    %c6_106 = arith.constant 6 : index
    %c0_107 = arith.constant 0 : index
    %c0_108 = arith.constant 0 : index
    %150 = vector.load %arg4[%c0_105, %c6_106, %c0_107, %c0_108] : memref<1x8x8x128xf32, #tpu.memory_space<vmem>>, vector<1x1x8x128xf32>
    %151 = vector.shape_cast %150 : vector<1x1x8x128xf32> to vector<8x128xf32>
    %152 = vector.shape_cast %101 : vector<8x128xf32> to vector<1x8x128xf32>
    %cst_109 = arith.constant dense<0.000000e+00> : vector<8x128xf32>
    %153 = vector.multi_reduction <add>, %152, %cst_109 [0] : vector<1x8x128xf32> to vector<8x128xf32>
    %154 = arith.addf %151, %153 : vector<8x128xf32>
    %c0_110 = arith.constant 0 : index
    %c6_111 = arith.constant 6 : index
    %c0_112 = arith.constant 0 : index
    %c0_113 = arith.constant 0 : index
    %155 = vector.load %arg4[%c0_110, %c6_111, %c0_112, %c0_113] : memref<1x8x8x128xf32, #tpu.memory_space<vmem>>, vector<1x1x8x128xf32>
    %156 = vector.shape_cast %155 : vector<1x1x8x128xf32> to vector<8x128xf32>
    %157 = vector.shape_cast %154 : vector<8x128xf32> to vector<1x1x8x128xf32>
    tpu.vector_store %arg4[%c0_110, %c6_111, %c0_112, %c0_113], %157 {strides = array<i32>} : memref<1x8x8x128xf32, #tpu.memory_space<vmem>>, vector<1x1x8x128xf32>,
    %c0_114 = arith.constant 0 : index
    %c7_115 = arith.constant 7 : index
    %c0_116 = arith.constant 0 : index
    %c0_117 = arith.constant 0 : index
    %158 = vector.load %arg4[%c0_114, %c7_115, %c0_116, %c0_117] : memref<1x8x8x128xf32, #tpu.memory_space<vmem>>, vector<1x1x8x128xf32>
    %159 = vector.shape_cast %158 : vector<1x1x8x128xf32> to vector<8x128xf32>
    %160 = vector.shape_cast %14 : vector<8x128xf32> to vector<1x8x128xf32>
    %cst_118 = arith.constant dense<0.000000e+00> : vector<8x128xf32>
    %161 = vector.multi_reduction <add>, %160, %cst_118 [0] : vector<1x8x128xf32> to vector<8x128xf32>
    %162 = arith.addf %159, %161 : vector<8x128xf32>
    %c0_119 = arith.constant 0 : index
    %c7_120 = arith.constant 7 : index
    %c0_121 = arith.constant 0 : index
    %c0_122 = arith.constant 0 : index
    %163 = vector.load %arg4[%c0_119, %c7_120, %c0_121, %c0_122] : memref<1x8x8x128xf32, #tpu.memory_space<vmem>>, vector<1x1x8x128xf32>
    %164 = vector.shape_cast %163 : vector<1x1x8x128xf32> to vector<8x128xf32>
    %165 = vector.shape_cast %162 : vector<8x128xf32> to vector<1x1x8x128xf32>
    tpu.vector_store %arg4[%c0_119, %c7_120, %c0_121, %c0_122], %165 {strides = array<i32>} : memref<1x8x8x128xf32, #tpu.memory_space<vmem>>, vector<1x1x8x128xf32>,
    return
  }
  func.func @transform_0(%arg0: i32, %arg1: i32) -> (i32, i32, i32) {
    %c1_i32 = arith.constant 1 : i32
    %0 = arith.muli %arg0, %c1_i32 : i32
    %1 = arith.addi %0, %arg1 : i32
    %c0_i32 = arith.constant 0 : i32
    %c0_i32_0 = arith.constant 0 : i32
    %c0_i32_1 = arith.constant 0 : i32
    return %c0_i32, %1, %c0_i32_0 : i32, i32, i32
  }
  func.func @transform_1(%arg0: i32, %arg1: i32) -> (i32, i32, i32, i32) {
    %c1_i32 = arith.constant 1 : i32
    %0 = arith.muli %arg0, %c1_i32 : i32
    %1 = arith.addi %0, %arg1 : i32
    %c0_i32 = arith.constant 0 : i32
    %c0_i32_0 = arith.constant 0 : i32
    %c0_i32_1 = arith.constant 0 : i32
    %c0_i32_2 = arith.constant 0 : i32
    return %c0_i32, %c0_i32_0, %1, %c0_i32_1 : i32, i32, i32, i32
  }
  func.func @transform_2(%arg0: i32, %arg1: i32) -> (i32, i32, i32, i32) {
    %c0_i32 = arith.constant 0 : i32
    %c0_i32_0 = arith.constant 0 : i32
    %c0_i32_1 = arith.constant 0 : i32
    %c0_i32_2 = arith.constant 0 : i32
    return %arg0, %c0_i32, %c0_i32_0, %c0_i32_1 : i32, i32, i32, i32
  }
}

</mosaic_0001>

<llo_original>
// kernel: tpu_custom_call.1
$region0: #{tpu_custom_call.1}
  #allocation0 [shape = 'u32[]', space=smem, size = 0x4, offset = 0x4, fixed_abs, tag = 'smem constant byte address 0x4 - core index']
  #allocation1 [shape = 'u32[144,128]{1,0:T(1,128)}', space=vmem, size = 0x12000, scoped, tag = 'internal scratch']
  %s0 = inlined_call_operand.hbm [shape: f32[11,16,128], index: 0, kind: input, shape index: {}]
  %s1 = inlined_call_operand.hbm [shape: f32[2,4,16,128], index: 1, kind: input, shape index: {}]
  %s2 = inlined_call_operand.hbm [shape: f32[2,8,8,128], index: 2, kind: output, shape index: {}]
  %s3 = sld [smem:[#allocation0]]
  $region53: #{tpu_custom_call.1} parent=0
    _
  %s5 = ssub.s32 1, %s3
  %s6 = scalar_select 0, %s5, %s3
  $region1: #{tpu_custom_call.1} parent=0
    #allocation2 [shape = 'u8[90112]{0}', space=vmem, size = 0x16000, scoped, tag = 'input window, operand 0']
    #allocation3 [shape = 's32[2]{0}', space=sflag, size = 0x8, scoped, tag = 'scoped memory for tpu_custom_call.1']
    #allocation4 [shape = 's32[2]{0}', space=sflag, size = 0x8, scoped, tag = 'scoped memory for tpu_custom_call.1']
    #allocation5 [shape = 'u8[65536]{0}', space=vmem, size = 0x10000, scoped, tag = 'input window, operand 1']
    #allocation6 [shape = 's32[2]{0}', space=sflag, size = 0x8, scoped, tag = 'scoped memory for tpu_custom_call.1']
    #allocation7 [shape = 'u8[65536]{0}', space=vmem, size = 0x10000, scoped, tag = 'output window, operand 0']
    %7 = vsyncpa [#allocation3], 0
    %s8 = scalar_lea.sflag [#allocation3], 1
    %9 = vsyncpa %s8, 0
    %10 = vsyncpa [#allocation6], 0
    %s11 = scalar_lea.sflag [#allocation6], 1
    %12 = vsyncpa %s11, 0
    %13 = vsyncpa [#allocation4], 0
    %s14 = scalar_lea.sflag [#allocation4], 1
    %15 = vsyncpa %s14, 0
    loop: start=0, step=1, limit=4
    $region2: #{tpu_custom_call.1} parent=1 // loop_pre_header
      _
    $region3: #{tpu_custom_call.1} parent=1 // loop_header
      %s17 = sphi 0, %s21
      %p18 = scmp.ge.s32.totalorder %s17, 4
      %s24 = sphi 0, %s36
      %s25 = sphi 0, %s32
      %s26 = sphi 0, %s24
      %s27 = sphi 0, %s25
      %s28 = sphi 0, %s26
      %s29 = sphi 0, %s27
      %s41 = sphi 0, %s43
      %s44 = sphi 0, %s41
      %s45 = sphi 0, %s44
      %s61 = sphi 0, %s45
      %s69 = sphi 0, %s71
      %s72 = sphi 0, %s69
      %s73 = sphi 0, %s72
      %s89 = sphi 0, %s73
      %s95 = sphi 0, %s97
      %s98 = sphi 0, %s95
      %s99 = sphi 0, %s98
      %s115 = sphi 0, %s99
    $region4: #{tpu_custom_call.1} parent=1 // loop_header_branch
      %20 = sbr.rel (%p18) target = $region8
    $region5: #{tpu_custom_call.1} parent=1 // loop_body
      %s22 = ssub.s32 %s17, 1
      %s23 = ssub.s32 %s17, 2
      %s30 = sadd.s32 1, %s25
      %p31 = scmp.ge.s32.totalorder %s30, 1
      %s32 = scalar_select %p31, 0, %s30
      %s33 = sadd.s32 1, %s24
      %s34 = scalar_select %p31, %s33, %s24
      %p35 = scmp.ge.s32.totalorder %s34, 2
      %s36 = scalar_select %p35, 0, %s34
      %s37 = sadd.s32 %s24, %s25
      %s38 = sadd.s32 %s36, %s32
      %s39 = ssub.s32 %s37, %s38
      %p40 = scmp.eq.s32.totalorder %s39, 0
      %s42 = sadd.s32 %s41, 1
      %s43 = scalar_select %p40, %s41, %s42
      %p46 = pneg %p40
      %p47 = scmp.eq.s32.totalorder %s17, 1
      %p48 = por %p46, %p47
      %p49 = scmp.ne.s32.totalorder %s41, %s44
      %p50 = scmp.eq.s32.totalorder %s17, 0
      %p51 = por %p49, %p50
      %p52 = scmp.ne.s32.totalorder %s41, %s44
      %p53 = scmp.eq.s32.totalorder %s22, 1
      %p54 = por %p52, %p53
      %p55 = scmp.ne.s32.totalorder %s44, %s45
      %p56 = scmp.eq.s32.totalorder %s22, 0
      %p57 = por %p55, %p56
      %p58 = scmp.ne.s32.totalorder %s44, %s45
      %p59 = scmp.eq.s32.totalorder %s23, 1
      %p60 = por %p58, %p59
      %p62 = scmp.ne.s32.totalorder %s45, %s61
      %p63 = scmp.eq.s32.totalorder %s23, 0
      %p64 = por %p62, %p63
      %s65 = sadd.s32 %s24, %s25
      %s66 = sadd.s32 %s36, %s32
      %s67 = ssub.s32 %s65, %s66
      %p68 = scmp.eq.s32.totalorder %s67, 0
      %s70 = sadd.s32 %s69, 1
      %s71 = scalar_select %p68, %s69, %s70
      %p74 = pneg %p68
      %p75 = scmp.eq.s32.totalorder %s17, 1
      %p76 = por %p74, %p75
      %p77 = scmp.ne.s32.totalorder %s69, %s72
      %p78 = scmp.eq.s32.totalorder %s17, 0
      %p79 = por %p77, %p78
      %p80 = scmp.ne.s32.totalorder %s69, %s72
      %p81 = scmp.eq.s32.totalorder %s22, 1
      %p82 = por %p80, %p81
      %p83 = scmp.ne.s32.totalorder %s72, %s73
      %p84 = scmp.eq.s32.totalorder %s22, 0
      %p85 = por %p83, %p84
      %p86 = scmp.ne.s32.totalorder %s72, %s73
      %p87 = scmp.eq.s32.totalorder %s23, 1
      %p88 = por %p86, %p87
      %p90 = scmp.ne.s32.totalorder %s73, %s89
      %p91 = scmp.eq.s32.totalorder %s23, 0
      %p92 = por %p90, %p91
      %s93 = ssub.s32 %s24, %s36
      %p94 = scmp.eq.s32.totalorder %s93, 0
      %s96 = sadd.s32 %s95, 1
      %s97 = scalar_select %p94, %s95, %s96
      %p100 = pneg %p94
      %p101 = scmp.eq.s32.totalorder %s17, 1
      %p102 = por %p100, %p101
      %p103 = scmp.ne.s32.totalorder %s95, %s98
      %p104 = scmp.eq.s32.totalorder %s17, 0
      %p105 = por %p103, %p104
      %p106 = scmp.ne.s32.totalorder %s95, %s98
      %p107 = scmp.eq.s32.totalorder %s22, 1
      %p108 = por %p106, %p107
      %p109 = scmp.ne.s32.totalorder %s98, %s99
      %p110 = scmp.eq.s32.totalorder %s22, 0
      %p111 = por %p109, %p110
      %p112 = scmp.ne.s32.totalorder %s98, %s99
      %p113 = scmp.eq.s32.totalorder %s23, 1
      %p114 = por %p112, %p113
      %p116 = scmp.ne.s32.totalorder %s99, %s115
      %p117 = scmp.eq.s32.totalorder %s23, 0
      %p118 = por %p116, %p117
      %p119 = scmp.le.s32.totalorder 1, %s17
      %p120 = scmp.lt.s32.totalorder %s17, 3
      %p121 = pnand %p119, %p120
      %p122 = pneg %p121
      // Predicated region
      $region9: #{tpu_custom_call.1} parent=5 // pred_check
        _
      $region10: #{tpu_custom_call.1} parent=5 // pred_check_branch
        %124 = sbr.rel (%p121) target = $region12
      $region11: #{tpu_custom_call.1} parent=5 // pred_region
        %s125 = ssub.s32 %s17, 1
      $region12: #{tpu_custom_call.1} parent=5 // pred_fallthru
        _
      %p126 = scmp.lt.s32.totalorder %s17, 2
      // Predicated region
      $region13: #{tpu_custom_call.1} parent=5 // pred_check
        %p127 = pneg %p126
      $region14: #{tpu_custom_call.1} parent=5 // pred_check_branch
        %129 = sbr.rel (%p127) target = $region16
      $region15: #{tpu_custom_call.1} parent=5 // pred_region
        // Predicated region
        $region17: #{tpu_custom_call.1} parent=15 // pred_check
          %p130 = pneg %p51
        $region18: #{tpu_custom_call.1} parent=15 // pred_check_branch
          %132 = sbr.rel (%p130) target = $region20
        $region19: #{tpu_custom_call.1} parent=15 // pred_region
          %s133 = sand.u32 %s41, 1
          %s134 = scalar_lea.sflag [#allocation3], %s133
          %s135 = sand.u32 %s41, 1
          %s136 = smul.addr %s135, 88
          %s137 = scalar_lea.vmem [#allocation2], %s136
          %s138 = sadd.s32 %s24, %s25
          %s140 = ssub.s32 1408, 1408
          %141 = vsyncadd %s134, %s140
          %s142 = smul.addr %s138, 128
          %s143 = scalar_lea.hbm %s0, %s142
          %s144 = sshll.u32 %s137, 4
          %s145 = int_to_ptr.vmem [resolvable:$true] %s144
          %150 = dma.hbm_to_vmem [thread:$0]  %s143, 1408, %s145, %s134, 256, 128, 8
        $region20: #{tpu_custom_call.1} parent=15 // pred_fallthru
          _
        // Predicated region
        $region21: #{tpu_custom_call.1} parent=15 // pred_check
          %p151 = pneg %p79
        $region22: #{tpu_custom_call.1} parent=15 // pred_check_branch
          %153 = sbr.rel (%p151) target = $region24
        $region23: #{tpu_custom_call.1} parent=15 // pred_region
          %s154 = sand.u32 %s69, 1
          %s155 = scalar_lea.sflag [#allocation6], %s154
          %s156 = sand.u32 %s69, 1
          %s157 = smul.addr %s156, 64
          %s158 = scalar_lea.vmem [#allocation5], %s157
          %s159 = sadd.s32 %s24, %s25
          %s161 = ssub.s32 1024, 1024
          %162 = vsyncadd %s155, %s161
          %s163 = smul.addr %s159, 128
          %s164 = scalar_lea.hbm %s1, %s163
          %s165 = sshll.u32 %s158, 4
          %s166 = int_to_ptr.vmem [resolvable:$true] %s165
          %171 = dma.hbm_to_vmem [thread:$0]  %s164, 1024, %s166, %s155, 256, 128, 8
        $region24: #{tpu_custom_call.1} parent=15 // pred_fallthru
          _
      $region16: #{tpu_custom_call.1} parent=5 // pred_fallthru
        _
      %p172 = scmp.le.s32.totalorder 1, %s17
      %p173 = scmp.lt.s32.totalorder %s17, 3
      %p174 = pnand %p172, %p173
      %p175 = pneg %p174
      // Predicated region
      $region25: #{tpu_custom_call.1} parent=5 // pred_check
        _
      $region26: #{tpu_custom_call.1} parent=5 // pred_check_branch
        %177 = sbr.rel (%p174) target = $region28
      $region27: #{tpu_custom_call.1} parent=5 // pred_region
        %s178 = ssub.s32 %s17, 1
        %s179 = sand.u32 %s44, 1
        %s180 = scalar_lea.sflag [#allocation3], %s179
        %s181 = sand.u32 %s44, 1
        %s182 = smul.addr %s181, 88
        %s183 = scalar_lea.vmem [#allocation2], %s182
        // Predicated region
        $region29: #{tpu_custom_call.1} parent=27 // pred_check
          %p184 = pneg %p57
        $region30: #{tpu_custom_call.1} parent=27 // pred_check_branch
          %186 = sbr.rel (%p184) target = $region32
        $region31: #{tpu_custom_call.1} parent=27 // pred_region
          %187 = dma.done %s180, 1408
        $region32: #{tpu_custom_call.1} parent=27 // pred_fallthru
          _
        %s188 = sand.u32 %s72, 1
        %s189 = scalar_lea.sflag [#allocation6], %s188
        %s190 = sand.u32 %s72, 1
        %s191 = smul.addr %s190, 64
        %s192 = scalar_lea.vmem [#allocation5], %s191
        // Predicated region
        $region33: #{tpu_custom_call.1} parent=27 // pred_check
          %p193 = pneg %p85
        $region34: #{tpu_custom_call.1} parent=27 // pred_check_branch
          %195 = sbr.rel (%p193) target = $region36
        $region35: #{tpu_custom_call.1} parent=27 // pred_region
          %196 = dma.done %s189, 1024
        $region36: #{tpu_custom_call.1} parent=27 // pred_fallthru
          _
        %s197 = sand.u32 %s44, 1
        %s198 = scalar_lea.sflag [#allocation3], %s197
        %s199 = sand.u32 %s44, 1
        %s200 = smul.addr %s199, 88
        %s201 = scalar_lea.vmem [#allocation2], %s200
        %p202 = pneg %p57
        %p203 = pneg %p54
        %s204 = sand.u32 %s72, 1
        %s205 = scalar_lea.sflag [#allocation6], %s204
        %s206 = sand.u32 %s72, 1
        %s207 = smul.addr %s206, 64
        %s208 = scalar_lea.vmem [#allocation5], %s207
        %p209 = pneg %p85
        %p210 = pneg %p82
        %p211 = pneg %p111
        %p212 = pneg %p108
        %s213 = sand.u32 %s98, 1
        %s214 = scalar_lea.sflag [#allocation4], %s213
        %s215 = sand.u32 %s98, 1
        %s216 = smul.addr %s215, 64
        %s217 = scalar_lea.vmem [#allocation7], %s216
        %s218 = sadd.s32 %s26, %s27
        %s219 = sadd.s32 %s26, %s27
        %p220 = scmp.eq.s32.totalorder %s27, 0
        // Predicated region
        $region37: #{tpu_custom_call.1} parent=27 // pred_check
          %p221 = pneg %p220
        $region38: #{tpu_custom_call.1} parent=27 // pred_check_branch
          %223 = sbr.rel (%p221) target = $region40
        $region39: #{tpu_custom_call.1} parent=27 // pred_region
          %224 = vst [vmem:[%s217] sm:$0xff] 0.0
          %225 = vst [vmem:[%s217 + $0x8] sm:$0xff] 0.0
          %226 = vst [vmem:[%s217 + $0x10] sm:$0xff] 0.0
          %227 = vst [vmem:[%s217 + $0x18] sm:$0xff] 0.0
          %228 = vst [vmem:[%s217 + $0x20] sm:$0xff] 0.0
          %229 = vst [vmem:[%s217 + $0x28] sm:$0xff] 0.0
          %230 = vst [vmem:[%s217 + $0x30] sm:$0xff] 0.0
          %231 = vst [vmem:[%s217 + $0x38] sm:$0xff] 0.0
        $region40: #{tpu_custom_call.1} parent=27 // pred_fallthru
          _
        %v232 = vld [vmem:[%s183] sm:$0xff]
        %s233 = scalar_lea.vmem %s183, 8 [#allocation2]
        %v234 = vld [vmem:[%s233] sm:$0xff]
        %s235 = scalar_lea.vmem %s183, 16 [#allocation2]
        %v236 = vld [vmem:[%s235] sm:$0xff]
        %s237 = scalar_lea.vmem %s183, 24 [#allocation2]
        %v238 = vld [vmem:[%s237] sm:$0xff]
        %s239 = scalar_lea.vmem %s183, 32 [#allocation2]
        %v240 = vld [vmem:[%s239] sm:$0xff]
        %s241 = scalar_lea.vmem %s183, 40 [#allocation2]
        %v242 = vld [vmem:[%s241] sm:$0xff]
        %s243 = scalar_lea.vmem %s183, 48 [#allocation2]
        %v244 = vld [vmem:[%s243] sm:$0xff]
        %s245 = scalar_lea.vmem %s183, 56 [#allocation2]
        %v246 = vld [vmem:[%s245] sm:$0xff]
        %s247 = scalar_lea.vmem %s183, 64 [#allocation2]
        %v248 = vld [vmem:[%s247] sm:$0xff]
        %s249 = scalar_lea.vmem %s183, 72 [#allocation2]
        %v250 = vld [vmem:[%s249] sm:$0xff]
        %s251 = scalar_lea.vmem %s183, 80 [#allocation2]
        %v252 = vld [vmem:[%s251] sm:$0xff]
        %v253 = vlog2.pop %v232
        %v254 = vmul.f32 %v253, 0.6931472
        %v255 = vmax.f32 %v254, -100.0
        %v256 = vsub.f32 1.0, %v232
        %v257 = vlog2.pop %v256
        %v258 = vmul.f32 %v257, 0.6931472
        %v259 = vmax.f32 %v258, -100.0
        %v260 = vmul.f32 %v246, %v255
        %v261 = vsub.f32 1.0, %v246
        %v262 = vmul.f32 %v261, %v259
        %v263 = vadd.f32 %v260, %v262
        %v264 = vsub.f32 0.0, %v263
        %v265 = vmul.f32 %v242, %v264
        %v266 = vlog2.pop %v234
        %v267 = vmul.f32 %v266, 0.6931472
        %v268 = vmax.f32 %v267, -100.0
        %v269 = vsub.f32 1.0, %v234
        %v270 = vlog2.pop %v269
        %v271 = vmul.f32 %v270, 0.6931472
        %v272 = vmax.f32 %v271, -100.0
        %v273 = vmul.f32 %v248, %v268
        %v274 = vsub.f32 1.0, %v248
        %v275 = vmul.f32 %v274, %v272
        %v276 = vadd.f32 %v273, %v275
        %v277 = vsub.f32 0.0, %v276
        %v278 = vmul.f32 %v242, %v277
        %v279 = vmul.f32 %v236, %v242
        %v280 = vmul.f32 %v250, %v242
        %v281 = vsub.f32 %v279, %v280
        %v282 = vmul.f32 %v281, %v281
        %v283 = vmul.f32 %v238, %v242
        %v284 = vmul.f32 %v252, %v242
        %v285 = vsub.f32 %v283, %v284
        %v286 = vmul.f32 %v285, %v285
        %v287 = vlog2.pop %v240
        %v288 = vmul.f32 %v287, 0.6931472
        %v289 = vmax.f32 %v288, -100.0
        %v290 = vsub.f32 1.0, %v240
        %v291 = vlog2.pop %v290
        %v292 = vmul.f32 %v291, 0.6931472
        %v293 = vmax.f32 %v292, -100.0
        %v294 = vmul.f32 %v242, %v289
        %v295 = vsub.f32 0.0, %v294
        %v296 = vmul.f32 %v244, %v293
        %v297 = vsub.f32 0.0, %v296
        %v298 = vld [vmem:[%s192] sm:$0xff]
        %v299 = vld [vmem:[%s192 + $0x8] sm:$0xff]
        %v300 = vld [vmem:[%s192 + $0x10] sm:$0xff]
        %v301 = vld [vmem:[%s192 + $0x18] sm:$0xff]
        %s302 = scalar_lea.vmem %s192, 32 [#allocation5]
        %v303 = vld [vmem:[%s302] sm:$0xff]
        %v304 = vld [vmem:[%s302 + $0x8] sm:$0xff]
        %v305 = vld [vmem:[%s302 + $0x10] sm:$0xff]
        %v306 = vld [vmem:[%s302 + $0x18] sm:$0xff]
        %v307 = vlog2.pop %v298
        %v308 = vmul.f32 %v307, 0.6931472
        %v309 = vlog2.pop %v299
        %v310 = vmul.f32 %v309, 0.6931472
        %v311 = vlog2.pop %v300
        %v312 = vmul.f32 %v311, 0.6931472
        %v313 = vlog2.pop %v301
        %v314 = vmul.f32 %v313, 0.6931472
        %v315 = vmax.f32 %v308, -100.0
        %v316 = vmax.f32 %v310, -100.0
        %v317 = vmax.f32 %v312, -100.0
        %v318 = vmax.f32 %v314, -100.0
        %v319 = vsub.f32 1.0, %v298
        %v320 = vsub.f32 1.0, %v299
        %v321 = vsub.f32 1.0, %v300
        %v322 = vsub.f32 1.0, %v301
        %v323 = vlog2.pop %v319
        %v324 = vmul.f32 %v323, 0.6931472
        %v325 = vlog2.pop %v320
        %v326 = vmul.f32 %v325, 0.6931472
        %v327 = vlog2.pop %v321
        %v328 = vmul.f32 %v327, 0.6931472
        %v329 = vlog2.pop %v322
        %v330 = vmul.f32 %v329, 0.6931472
        %v331 = vmax.f32 %v324, -100.0
        %v332 = vmax.f32 %v326, -100.0
        %v333 = vmax.f32 %v328, -100.0
        %v334 = vmax.f32 %v330, -100.0
        %v335 = vmul.f32 %v303, %v315
        %v336 = vmul.f32 %v304, %v316
        %v337 = vmul.f32 %v305, %v317
        %v338 = vmul.f32 %v306, %v318
        %v339 = vsub.f32 1.0, %v303
        %v340 = vsub.f32 1.0, %v304
        %v341 = vsub.f32 1.0, %v305
        %v342 = vsub.f32 1.0, %v306
        %v343 = vmul.f32 %v339, %v331
        %v344 = vmul.f32 %v340, %v332
        %v345 = vmul.f32 %v341, %v333
        %v346 = vmul.f32 %v342, %v334
        %v347 = vadd.f32 %v335, %v343
        %v348 = vadd.f32 %v336, %v344
        %v349 = vadd.f32 %v337, %v345
        %v350 = vadd.f32 %v338, %v346
        %v351 = vsub.f32 0.0, %v347
        %v352 = vsub.f32 0.0, %v348
        %v353 = vsub.f32 0.0, %v349
        %v354 = vsub.f32 0.0, %v350
        %v355 = vmul.f32 %v242, %v351
        %v356 = vmul.f32 %v242, %v352
        %v357 = vmul.f32 %v242, %v353
        %v358 = vmul.f32 %v242, %v354
        %v359 = vadd.f32 %v355, %v356
        %v360 = vadd.f32 %v359, %v357
        %v361 = vadd.f32 %v360, %v358
        %v362 = vld [vmem:[%s217] sm:$0xff]
        %v363 = vadd.f32 %v265, 0.0
        %v364 = vadd.f32 %v362, %v363
        %365 = vst [vmem:[%s217] sm:$0xff] %v364
        %s366 = scalar_lea.vmem %s217, 8 [#allocation7]
        %v367 = vld [vmem:[%s366] sm:$0xff]
        %v368 = vadd.f32 %v278, 0.0
        %v369 = vadd.f32 %v367, %v368
        %370 = vst [vmem:[%s366] sm:$0xff] %v369
        %s371 = scalar_lea.vmem %s217, 16 [#allocation7]
        %v372 = vld [vmem:[%s371] sm:$0xff]
        %v373 = vadd.f32 %v282, 0.0
        %v374 = vadd.f32 %v372, %v373
        %375 = vst [vmem:[%s371] sm:$0xff] %v374
        %s376 = scalar_lea.vmem %s217, 24 [#allocation7]
        %v377 = vld [vmem:[%s376] sm:$0xff]
        %v378 = vadd.f32 %v286, 0.0
        %v379 = vadd.f32 %v377, %v378
        %380 = vst [vmem:[%s376] sm:$0xff] %v379
        %s381 = scalar_lea.vmem %s217, 32 [#allocation7]
        %v382 = vld [vmem:[%s381] sm:$0xff]
        %v383 = vadd.f32 %v295, 0.0
        %v384 = vadd.f32 %v382, %v383
        %385 = vst [vmem:[%s381] sm:$0xff] %v384
        %s386 = scalar_lea.vmem %s217, 40 [#allocation7]
        %v387 = vld [vmem:[%s386] sm:$0xff]
        %v388 = vadd.f32 %v297, 0.0
        %v389 = vadd.f32 %v387, %v388
        %390 = vst [vmem:[%s386] sm:$0xff] %v389
        %s391 = scalar_lea.vmem %s217, 48 [#allocation7]
        %v392 = vld [vmem:[%s391] sm:$0xff]
        %v393 = vadd.f32 %v361, 0.0
        %v394 = vadd.f32 %v392, %v393
        %395 = vst [vmem:[%s391] sm:$0xff] %v394
        %s396 = scalar_lea.vmem %s217, 56 [#allocation7]
        %v397 = vld [vmem:[%s396] sm:$0xff]
        %v398 = vadd.f32 %v242, 0.0
        %v399 = vadd.f32 %v397, %v398
        %400 = vst [vmem:[%s396] sm:$0xff] %v399
        %s401 = sand.u32 %s98, 1
        %s402 = scalar_lea.sflag [#allocation4], %s401
        %s403 = sand.u32 %s98, 1
        %s404 = smul.addr %s403, 64
        %s405 = scalar_lea.vmem [#allocation7], %s404
        // Predicated region
        $region41: #{tpu_custom_call.1} parent=27 // pred_check
          %p406 = pneg %p108
        $region42: #{tpu_custom_call.1} parent=27 // pred_check_branch
          %408 = sbr.rel (%p406) target = $region44
        $region43: #{tpu_custom_call.1} parent=27 // pred_region
          %s410 = ssub.s32 1024, 1024
          %411 = vsyncadd %s402, %s410
          %s412 = smul.addr %s26, 8
          %s413 = smul.addr %s412, 128
          %s414 = scalar_lea.hbm %s2, %s413
          %s415 = sshll.u32 %s405, 4
          %s416 = int_to_ptr.vmem [resolvable:$true] %s415
          %421 = dma.vmem_to_hbm [thread:$0]  %s416, 1024, %s414, %s402, 128, 128, 8
        $region44: #{tpu_custom_call.1} parent=27 // pred_fallthru
          _
      $region28: #{tpu_custom_call.1} parent=5 // pred_fallthru
        _
      %p422 = scmp.le.s32.totalorder 2, %s17
      // Predicated region
      $region45: #{tpu_custom_call.1} parent=5 // pred_check
        %p423 = pneg %p422
      $region46: #{tpu_custom_call.1} parent=5 // pred_check_branch
        %425 = sbr.rel (%p423) target = $region48
      $region47: #{tpu_custom_call.1} parent=5 // pred_region
        %s426 = ssub.s32 %s17, 2
        // Predicated region
        $region49: #{tpu_custom_call.1} parent=47 // pred_check
          %p427 = pneg %p114
        $region50: #{tpu_custom_call.1} parent=47 // pred_check_branch
          %429 = sbr.rel (%p427) target = $region52
        $region51: #{tpu_custom_call.1} parent=47 // pred_region
          %s430 = sand.u32 %s99, 1
          %s431 = scalar_lea.sflag [#allocation4], %s430
          %s432 = sand.u32 %s99, 1
          %s433 = smul.addr %s432, 64
          %s434 = scalar_lea.vmem [#allocation7], %s433
          %435 = dma.done %s431, 1024
        $region52: #{tpu_custom_call.1} parent=47 // pred_fallthru
          _
      $region48: #{tpu_custom_call.1} parent=5 // pred_fallthru
        _
    $region6: #{tpu_custom_call.1} parent=1 // loop_footer
      %s21 = sadd.s32 1, %s17
    $region7: #{tpu_custom_call.1} parent=1 // loop_footer_branch
      %16 = sbr.rel target = $region3
    $region8: #{tpu_custom_call.1} parent=1 // loop_exit
      _
    %436 = vsyncpa [#allocation3], 1
    %s437 = scalar_lea.sflag [#allocation3], 1
    %438 = vsyncpa %s437, 1
    %439 = vsyncpa [#allocation6], 1
    %s440 = scalar_lea.sflag [#allocation6], 1
    %441 = vsyncpa %s440, 1
    %442 = vsyncpa [#allocation4], 1
    %s443 = scalar_lea.sflag [#allocation4], 1
    %444 = vsyncpa %s443, 1

</llo_original>
